<compile_context>
chip_gen: v5e
topology: v5e:2x2
jax: 0.10.0
libtpu: 0.0.40
codegen_flags: <defaults>
</compile_context>

<pallas_src>
import enum
import math
import functools

import jax
import jax.numpy as jnp
from jax.experimental import pallas as pl
from jax.experimental.pallas import tpu as pltpu


class SirenLayerType(enum.Enum):
    FIRST = enum.auto()
    HIDDEN = enum.auto()
    LAST = enum.auto()


_LANE = 128
_SUBLANE = 8


def _round_up(x, m):
    return ((x + m - 1) // m) * m


def _vmem_capacity_bytes():
    """Physical VMEM of this TPU generation (v5e/v6e: 128 MiB, v7x: 64 MiB/TC)."""
    try:
        return int(pltpu.get_tpu_info().vmem_capacity_bytes)
    except Exception:
        pass
    try:
        kind = jax.devices()[0].device_kind.lower()
        if "v5" in kind or "v6" in kind:
            return 128 * 1024 * 1024
    except Exception:
        pass
    return 64 * 1024 * 1024          # conservative (v7x-sized) fallback


def _choose_row_tile(N, dims, cdt_itemsize, out_itemsize, row_tile_cap,
                     weight_buffers, vmem_cap):
    """Largest row tile that fits a generation-aware VMEM budget."""
    vmem_limit = int(min(vmem_cap * 3 // 4, 96 * 1024 * 1024))
    budget = int(vmem_limit * 0.65)          # headroom for Mosaic internal temps

    # Resident weights / biases (single copy with Buffered(1), else 2 copies).
    weight_bytes = 0
    for l in range(len(dims) - 1):
        weight_bytes += weight_buffers * dims[l] * dims[l + 1] * cdt_itemsize
        weight_bytes += weight_buffers * dims[l + 1] * 4

    pad = lambda d: _round_up(d, _LANE)      # VMEM is lane-padded internally
    d_in, d_out, d_max = dims[0], dims[-1], max(dims)
    per_row = (4 * 2 * pad(d_in)             # double-buffered x row tile (f32)
               + out_itemsize * 2 * pad(d_out)   # double-buffered out row tile
               + 4 * 4 * pad(d_max)          # live f32 intermediates + slack
               + cdt_itemsize * 2 * pad(d_max))  # compute-dtype activation copies

    avail = budget - weight_bytes
    if avail < per_row * _SUBLANE:
        avail = per_row * _SUBLANE           # degenerate huge stack: tiny tile

    tm = min(avail // per_row, int(row_tile_cap), N)

    # Keep >= 2 row tiles when N allows so the "parallel" grid axis can split
    # across TensorCores (megacore / v7x has 2 TCs per chip).
    while tm >= 2 * _LANE and pl.cdiv(N, tm) < 2:
        tm //= 2

    if tm >= N:
        return N, vmem_limit                 # block == full dim is always legal
    if tm >= _LANE:
        tm = (tm // _LANE) * _LANE
    else:
        tm = max(_SUBLANE, (tm // _SUBLANE) * _SUBLANE)
    return tm, vmem_limit


def _resident_spec(shape, use_buffered):
    """BlockSpec for a weight/bias whose block is identical for every step."""
    index_map = lambda i: (0, 0)
    if use_buffered:
        try:
            # Single resident copy (no redundant second pipeline buffer).
            return pl.BlockSpec(shape, index_map, pipeline_mode=pl.Buffered(1))
        except Exception:
            pass                             # older JAX: fall back silently
    return pl.BlockSpec(shape, index_map)


def _siren_stack_kernel(x_ref, *refs, activate, omega_scale, compute_dtype,
                        precision):
    """Fused forward over a stack of SIREN layers for one row tile.

    refs = (w0, b0, w1, b1, ..., w_{L-1}, b_{L-1}, o_ref)
    w_l : [d_l, d_{l+1}] (transposed, compute_dtype, omega pre-folded if asked)
    b_l : [1, d_{l+1}] float32.
    """
    o_ref = refs[-1]
    wb = refs[:-1]
    n_layers = len(wb) // 2

    h = x_ref[...].astype(compute_dtype)     # single cast of the input tile
    for l in range(n_layers):
        w = wb[2 * l][...]
        b = wb[2 * l + 1][...]               # [1, d_out] f32
        y = jnp.dot(h, w, preferred_element_type=jnp.float32,
                    precision=precision)     # MXU, f32 accumulation
        y = y + b                            # f32 epilogue
        if activate[l]:
            if omega_scale is not None:      # only when omega is NOT folded
                y = omega_scale * y
            y = jnp.sin(y)                   # f32 sin on VPU/EUP
        h = y.astype(compute_dtype) if l + 1 < n_layers else y
    o_ref[...] = h.astype(o_ref.dtype)


def siren_network_forward(x, params, layer_types, *, omega_0=30.0,
                          row_tile=None, compute_dtype=jnp.bfloat16,
                          precision=None, fold_omega=True, vmem_bytes=None):
    """Fused forward through a stack of SirenLayers in a single pallas_call.

    x:           [..., in_features] float32
    params:      list of (weight [out_f, in_f], bias [out_f])  (PyTorch layout)
    layer_types: list of SirenLayerType (FIRST/HIDDEN apply sin(omega_0 * y))
    """
    n_layers = len(params)
    assert n_layers >= 1 and len(layer_types) == n_layers

    orig_shape = x.shape
    if x.ndim != 2:
        x = x.reshape(-1, orig_shape[-1])
    N, in_f = x.shape

    dims = [in_f]
    for (w, _b) in params:
        out_f, w_in = w.shape
        if w_in != dims[-1]:
            raise ValueError("layer feature sizes must chain")
        dims.append(out_f)

    activate = tuple(t in (SirenLayerType.FIRST, SirenLayerType.HIDDEN)
                     for t in layer_types)
    cdt = (jnp.dtype(compute_dtype) if compute_dtype is not None
           else jnp.dtype(jnp.float32))

    # Transpose weights to [in, out]; fold omega_0 into activated layers' W/b
    # (sin(omega*(xW+b)) == sin(x(omega W) + omega b)); cast weights once.
    ops = []
    for l, (w, b) in enumerate(params):
        wt = jnp.asarray(w, jnp.float32).T
        bt = jnp.asarray(b, jnp.float32).reshape(1, -1)
        if fold_omega and activate[l]:
            wt = wt * omega_0
            bt = bt * omega_0
        ops.append(wt.astype(cdt))
        ops.append(bt)                       # bias stays f32 (accurate epilogue)

    vmem_cap = int(vmem_bytes) if vmem_bytes is not None else _vmem_capacity_bytes()
    cap = int(row_tile) if row_tile is not None else (
        4096 if vmem_cap >= 100 * 1024 * 1024 else 2048)

    kernel = functools.partial(
        _siren_stack_kernel, activate=activate,
        omega_scale=None if fold_omega else float(omega_0),
        compute_dtype=cdt, precision=precision)

    def _run(use_buffered):
        tm, vmem_limit = _choose_row_tile(
            N, dims, cdt.itemsize, x.dtype.itemsize, cap,
            weight_buffers=1 if use_buffered else 2, vmem_cap=vmem_cap)
        in_specs = [pl.BlockSpec((tm, in_f), lambda i: (i, 0))]   # unpadded x
        for l in range(n_layers):
            in_specs.append(_resident_spec((dims[l], dims[l + 1]), use_buffered))
            in_specs.append(_resident_spec((1, dims[l + 1]), use_buffered))
        return pl.pallas_call(
            kernel,
            out_shape=jax.ShapeDtypeStruct((N, dims[-1]), x.dtype),  # unpadded out
            grid_spec=pltpu.PrefetchScalarGridSpec(
                num_scalar_prefetch=0,
                grid=(pl.cdiv(N, tm),),
                in_specs=in_specs,
                out_specs=pl.BlockSpec((tm, dims[-1]), lambda i: (i, 0))),
            compiler_params=pltpu.CompilerParams(
                dimension_semantics=("parallel",),
                vmem_limit_bytes=int(vmem_limit)),
        )(x, *ops)

    try:
        out = _run(use_buffered=True)
    except Exception:
        out = _run(use_buffered=False)       # Buffered(1) unsupported: fall back

    if len(orig_shape) != 2:
        out = out.reshape(*orig_shape[:-1], dims[-1])
    return out


def siren_layer_forward(x, weight, bias, *, layer_type=SirenLayerType.HIDDEN,
                        omega_0=30.0, **kwargs):
    """Single SirenLayer forward (matches the PyTorch module)."""
    return siren_network_forward(x, [(weight, bias)], [layer_type],
                                 omega_0=omega_0, **kwargs)


def init_siren_params(key, in_features, out_features,
                      layer_type=SirenLayerType.HIDDEN, omega_0=30.0):
    """Init matching SirenLayer.reset_parameters (same uniform ranges)."""
    weight_ranges = {
        SirenLayerType.FIRST: 1.0 / in_features,
        SirenLayerType.HIDDEN: math.sqrt(6.0 / in_features) / omega_0,
        SirenLayerType.LAST: math.sqrt(6.0 / in_features),
    }
    w_range = weight_ranges[layer_type]
    k_sqrt = math.sqrt(1.0 / in_features)
    kw, kb = jax.random.split(key)
    weight = jax.random.uniform(kw, (out_features, in_features),
                                minval=-w_range, maxval=w_range, dtype=jnp.float32)
    bias = jax.random.uniform(kb, (out_features,),
                              minval=-k_sqrt, maxval=k_sqrt, dtype=jnp.float32)
    return weight, bias


def _siren_reference(x, params, layer_types, omega_0, *, compute_dtype=None,
                     fold_omega=False):
    """Pure-JAX reference; can mimic the kernel's bf16 / omega-fold numerics."""
    cdt = (jnp.dtype(compute_dtype) if compute_dtype is not None
           else jnp.dtype(jnp.float32))
    h = jnp.asarray(x, jnp.float32)
    for (w, b), t in zip(params, layer_types):
        act = t in (SirenLayerType.FIRST, SirenLayerType.HIDDEN)
        wt = jnp.asarray(w, jnp.float32).T
        bt = jnp.asarray(b, jnp.float32)
        if fold_omega and act:
            wt = wt * omega_0
            bt = bt * omega_0
        y = jnp.dot(h.astype(cdt), wt.astype(cdt),
                    preferred_element_type=jnp.float32) + bt
        if act:
            if not fold_omega:
                y = omega_0 * y
            y = jnp.sin(y)
        h = y
    return h


if __name__ == "__main__":
    key = jax.random.PRNGKey(0)
    k_x, k_p0, k_p1, k_p2, k_x2 = jax.random.split(key, 5)
    omega_0 = 30.0

    # --- 1) single SirenLayer (matches the PyTorch module spec) -------------
    N, in_f, out_f = 8, 32, 32
    x = jax.random.normal(k_x, (N, in_f), dtype=jnp.float32)
    w, b = init_siren_params(k_p0, in_f, out_f, SirenLayerType.HIDDEN, omega_0)

    # Exact-parity mode (f32 MXU inputs, omega kept inside the kernel).
    out_f32 = siren_layer_forward(x, w, b, layer_type=SirenLayerType.HIDDEN,
                                  omega_0=omega_0, compute_dtype=jnp.float32,
                                  fold_omega=False)
    out_f32 = jax.block_until_ready(out_f32)
    ref_f32 = _siren_reference(x, [(w, b)], [SirenLayerType.HIDDEN], omega_0)
    assert out_f32.shape == (N, out_f)
    assert jnp.allclose(out_f32, ref_f32, atol=2e-5, rtol=2e-5)

    # Default fast mode (bf16 MXU inputs, omega folded into W/b).
    out_bf16 = siren_layer_forward(x, w, b, layer_type=SirenLayerType.HIDDEN,
                                   omega_0=omega_0)
    out_bf16 = jax.block_until_ready(out_bf16)
    ref_bf16 = _siren_reference(x, [(w, b)], [SirenLayerType.HIDDEN], omega_0,
                                compute_dtype=jnp.bfloat16, fold_omega=True)
    assert jnp.allclose(out_bf16, ref_bf16, atol=2e-2, rtol=2e-2)

    # --- 2) fused 3-layer SIREN stack (FIRST -> HIDDEN -> LAST) -------------
    N2, d_in, d_hid, d_out = 16, 2, 32, 1
    x2 = jax.random.uniform(k_x2, (N2, d_in), minval=-1.0, maxval=1.0,
                            dtype=jnp.float32)
    params = [
        init_siren_params(k_p0, d_in, d_hid, SirenLayerType.FIRST, omega_0),
        init_siren_params(k_p1, d_hid, d_hid, SirenLayerType.HIDDEN, omega_0),
        init_siren_params(k_p2, d_hid, d_out, SirenLayerType.LAST, omega_0),
    ]
    types = [SirenLayerType.FIRST, SirenLayerType.HIDDEN, SirenLayerType.LAST]

    # Exact-parity mode.
    out2_f32 = siren_network_forward(x2, params, types, omega_0=omega_0,
                                     compute_dtype=jnp.float32, fold_omega=False)
    out2_f32 = jax.block_until_ready(out2_f32)
    ref2_f32 = _siren_reference(x2, params, types, omega_0)
    assert out2_f32.shape == (N2, d_out)
    assert jnp.allclose(out2_f32, ref2_f32, atol=1e-3, rtol=1e-3)

    # Default fast mode; compared against the bf16-mimicking reference
    # (loose tolerance: intermediate bf16 rounding can flip ulps per layer).
    out2_bf16 = siren_network_forward(x2, params, types, omega_0=omega_0)
    out2_bf16 = jax.block_until_ready(out2_bf16)
    ref2_bf16 = _siren_reference(x2, params, types, omega_0,
                                 compute_dtype=jnp.bfloat16, fold_omega=True)
    assert out2_bf16.shape == (N2, d_out)
    assert bool(jnp.all(jnp.isfinite(out2_bf16)))
    assert jnp.allclose(out2_bf16, ref2_bf16, atol=5e-2, rtol=5e-2)

    print("KERNEL_OK")
</pallas_src>

<mosaic_0001>
module attributes {stable_mosaic.version = 11 : i64} {
  func.func @_siren_stack_kernel(%arg0: i32, %arg1: memref<8x32xf32, #tpu.memory_space<vmem>>, %arg2: memref<32x32xf32, #tpu.memory_space<vmem>>, %arg3: memref<1x32xf32, #tpu.memory_space<vmem>>, %arg4: memref<8x32xf32, #tpu.memory_space<vmem>>) attributes {dimension_semantics = [#tpu.dimension_semantics<parallel>], iteration_bounds = array<i64: 1>, scalar_prefetch = 0 : i64, scratch_operands = 0 : i64, tpu.core_type = #tpu.core_type<tc>, window_params = [{transform_indices = @transform_0, window_bounds = array<i64: 8, 32>}, {pipeline_mode = #tpu.pipeline_mode<synchronous>, transform_indices = @transform_1, window_bounds = array<i64: 32, 32>}, {pipeline_mode = #tpu.pipeline_mode<synchronous>, transform_indices = @transform_2, window_bounds = array<i64: 1, 32>}, {transform_indices = @transform_3, window_bounds = array<i64: 8, 32>}]} {
    %c0 = arith.constant 0 : index
    %c0_0 = arith.constant 0 : index
    %0 = vector.load %arg1[%c0, %c0_0] : memref<8x32xf32, #tpu.memory_space<vmem>>, vector<8x32xf32>
    %c0_1 = arith.constant 0 : index
    %c0_2 = arith.constant 0 : index
    %1 = vector.load %arg2[%c0_1, %c0_2] : memref<32x32xf32, #tpu.memory_space<vmem>>, vector<32x32xf32>
    %c0_3 = arith.constant 0 : index
    %c0_4 = arith.constant 0 : index
    %2 = vector.load %arg3[%c0_3, %c0_4] : memref<1x32xf32, #tpu.memory_space<vmem>>, vector<1x32xf32>
    %cst = arith.constant dense<0.000000e+00> : vector<8x32xf32>
    %3 = tpu.matmul %0, %1, %cst {dimension_numbers = #tpu.dot_dimension_numbers<[1], [0], [0], [1], [0, 0, 1, 1], [], []>} : vector<8x32xf32>, vector<32x32xf32>, vector<8x32xf32> -> vector<8x32xf32>
    %4 = vector.broadcast %2 : vector<1x32xf32> to vector<8x32xf32>
    %5 = arith.addf %3, %4 : vector<8x32xf32>
    %cst_5 = arith.constant 3.000000e+01 : f32
    %6 = vector.broadcast %cst_5 : f32 to vector<8x32xf32>
    %7 = arith.mulf %6, %5 : vector<8x32xf32>
    %8 = math.sin %7 : vector<8x32xf32>
    %c0_6 = arith.constant 0 : index
    %c0_7 = arith.constant 0 : index
    %9 = vector.load %arg4[%c0_6, %c0_7] : memref<8x32xf32, #tpu.memory_space<vmem>>, vector<8x32xf32>
    tpu.vector_store %arg4[%c0_6, %c0_7], %8 {strides = array<i32>} : memref<8x32xf32, #tpu.memory_space<vmem>>, vector<8x32xf32>,
    return
  }
  func.func @transform_0(%arg0: i32) -> (i32, i32) {
    %c0_i32 = arith.constant 0 : i32
    %c0_i32_0 = arith.constant 0 : i32
    return %arg0, %c0_i32 : i32, i32
  }
  func.func @transform_1(%arg0: i32) -> (i32, i32) {
    %c0_i32 = arith.constant 0 : i32
    %c0_i32_0 = arith.constant 0 : i32
    %c0_i32_1 = arith.constant 0 : i32
    return %c0_i32, %c0_i32_0 : i32, i32
  }
  func.func @transform_2(%arg0: i32) -> (i32, i32) {
    %c0_i32 = arith.constant 0 : i32
    %c0_i32_0 = arith.constant 0 : i32
    %c0_i32_1 = arith.constant 0 : i32
    return %c0_i32, %c0_i32_0 : i32, i32
  }
  func.func @transform_3(%arg0: i32) -> (i32, i32) {
    %c0_i32 = arith.constant 0 : i32
    %c0_i32_0 = arith.constant 0 : i32
    return %arg0, %c0_i32 : i32, i32
  }
}

module attributes {stable_mosaic.version = 11 : i64} {
  func.func @_siren_stack_kernel(%arg0: i32, %arg1: memref<8x32xf32, #tpu.memory_space<vmem>>, %arg2: memref<32x32xf32, #tpu.memory_space<vmem>>, %arg3: memref<1x32xf32, #tpu.memory_space<vmem>>, %arg4: memref<8x32xf32, #tpu.memory_space<vmem>>) attributes {dimension_semantics = [#tpu.dimension_semantics<parallel>], iteration_bounds = array<i64: 1>, scalar_prefetch = 0 : i64, scratch_operands = 0 : i64, tpu.core_type = #tpu.core_type<tc>, window_params = [{transform_indices = @transform_0, window_bounds = array<i64: 8, 32>}, {pipeline_mode = #tpu.pipeline_mode<synchronous>, transform_indices = @transform_1, window_bounds = array<i64: 32, 32>}, {pipeline_mode = #tpu.pipeline_mode<synchronous>, transform_indices = @transform_2, window_bounds = array<i64: 1, 32>}, {transform_indices = @transform_3, window_bounds = array<i64: 8, 32>}]} {
    %c0 = arith.constant 0 : index
    %c0_0 = arith.constant 0 : index
    %0 = vector.load %arg1[%c0, %c0_0] : memref<8x32xf32, #tpu.memory_space<vmem>>, vector<8x32xf32>
    %c0_1 = arith.constant 0 : index
    %c0_2 = arith.constant 0 : index
    %1 = vector.load %arg2[%c0_1, %c0_2] : memref<32x32xf32, #tpu.memory_space<vmem>>, vector<32x32xf32>
    %c0_3 = arith.constant 0 : index
    %c0_4 = arith.constant 0 : index
    %2 = vector.load %arg3[%c0_3, %c0_4] : memref<1x32xf32, #tpu.memory_space<vmem>>, vector<1x32xf32>
    %cst = arith.constant dense<0.000000e+00> : vector<8x32xf32>
    %3 = tpu.matmul %0, %1, %cst {dimension_numbers = #tpu.dot_dimension_numbers<[1], [0], [0], [1], [0, 0, 1, 1], [], []>} : vector<8x32xf32>, vector<32x32xf32>, vector<8x32xf32> -> vector<8x32xf32>
    %4 = vector.broadcast %2 : vector<1x32xf32> to vector<8x32xf32>
    %5 = arith.addf %3, %4 : vector<8x32xf32>
    %cst_5 = arith.constant 3.000000e+01 : f32
    %6 = vector.broadcast %cst_5 : f32 to vector<8x32xf32>
    %7 = arith.mulf %6, %5 : vector<8x32xf32>
    %8 = math.sin %7 : vector<8x32xf32>
    %c0_6 = arith.constant 0 : index
    %c0_7 = arith.constant 0 : index
    %9 = vector.load %arg4[%c0_6, %c0_7] : memref<8x32xf32, #tpu.memory_space<vmem>>, vector<8x32xf32>
    tpu.vector_store %arg4[%c0_6, %c0_7], %8 {strides = array<i32>} : memref<8x32xf32, #tpu.memory_space<vmem>>, vector<8x32xf32>,
    return
  }
  func.func @transform_0(%arg0: i32) -> (i32, i32) {
    %c0_i32 = arith.constant 0 : i32
    %c0_i32_0 = arith.constant 0 : i32
    return %arg0, %c0_i32 : i32, i32
  }
  func.func @transform_1(%arg0: i32) -> (i32, i32) {
    %c0_i32 = arith.constant 0 : i32
    %c0_i32_0 = arith.constant 0 : i32
    %c0_i32_1 = arith.constant 0 : i32
    return %c0_i32, %c0_i32_0 : i32, i32
  }
  func.func @transform_2(%arg0: i32) -> (i32, i32) {
    %c0_i32 = arith.constant 0 : i32
    %c0_i32_0 = arith.constant 0 : i32
    %c0_i32_1 = arith.constant 0 : i32
    return %c0_i32, %c0_i32_0 : i32, i32
  }
  func.func @transform_3(%arg0: i32) -> (i32, i32) {
    %c0_i32 = arith.constant 0 : i32
    %c0_i32_0 = arith.constant 0 : i32
    return %arg0, %c0_i32 : i32, i32
  }
}

</mosaic_0001>

<llo_original>
// kernel: tpu_custom_call.1
$region0: #{tpu_custom_call.1}
  #allocation0 [shape = 'u32[]', space=smem, size = 0x4, offset = 0x4, fixed_abs, tag = 'smem constant byte address 0x4 - core index']
  #allocation1 [shape = 'u32[72,128]{1,0:T(1,128)}', space=vmem, size = 0x9000, scoped, tag = 'internal scratch']
  %s0 = inlined_call_operand.hbm [shape: f32[8,32], index: 0, kind: input, shape index: {}]
  %s1 = inlined_call_operand.hbm [shape: f32[32,32], index: 1, kind: input, shape index: {}]
  %s2 = inlined_call_operand.vmem [shape: f32[1,32], index: 2, kind: input, shape index: {}]
  %s3 = inlined_call_operand.hbm [shape: f32[8,32], index: 3, kind: output, shape index: {}]
  %s4 = sld [smem:[#allocation0]]
  $region30: #{tpu_custom_call.1} parent=0
    _
  %s6 = ssub.s32 1, %s4
  %s7 = scalar_select 0, %s6, %s4
  $region1: #{tpu_custom_call.1} parent=0
    #allocation2 [shape = 'u8[4096]{0}', space=vmem, size = 0x1000, scoped, tag = 'input window, operand 0, single buffered']
    #allocation3 [shape = 's32[1]{0}', space=sflag, size = 0x4, scoped, tag = 'scoped memory for tpu_custom_call.1']
    #allocation4 [shape = 's32[1]{0}', space=sflag, size = 0x4, scoped, tag = 'scoped memory for tpu_custom_call.1']
    #allocation5 [shape = 'u8[16384]{0}', space=vmem, size = 0x4000, scoped, tag = 'input window, operand 1, single buffered']
    #allocation6 [shape = 's32[1]{0}', space=sflag, size = 0x4, scoped, tag = 'scoped memory for tpu_custom_call.1']
    #allocation7 [shape = 'u8[4096]{0}', space=vmem, size = 0x1000, scoped, tag = 'output window, operand 0, single buffered']
    %8 = vsyncpa [#allocation3], 0
    %9 = vsyncpa [#allocation6], 0
    %10 = vsyncpa [#allocation4], 0
    // Predicated region
    $region2: #{tpu_custom_call.1} parent=1 // pred_check
      _
    $region3: #{tpu_custom_call.1} parent=1 // pred_check_branch
      %12 = sbr.rel (0) target = $region5
    $region4: #{tpu_custom_call.1} parent=1 // pred_region
      %14 = vsyncadd [#allocation3], 0
      %s16 = sshll.u32 %s0, 4
      %s17 = int_to_ptr.hbm [resolvable:$true] %s16
      %s18 = sshll.u32 [#allocation2], 4
      %s19 = int_to_ptr.vmem [resolvable:$true] %s18
      %21 = dma.hbm_to_vmem [thread:$0]  %s17, 128, %s19, [#allocation3]
    $region5: #{tpu_custom_call.1} parent=1 // pred_fallthru
      _
    // Predicated region
    $region6: #{tpu_custom_call.1} parent=1 // pred_check
      _
    $region7: #{tpu_custom_call.1} parent=1 // pred_check_branch
      %23 = sbr.rel (0) target = $region9
    $region8: #{tpu_custom_call.1} parent=1 // pred_region
      %25 = vsyncadd [#allocation6], 0
      %s26 = sshll.u32 %s1, 4
      %s27 = int_to_ptr.hbm [resolvable:$true] %s26
      %s28 = sshll.u32 [#allocation5], 4
      %s29 = int_to_ptr.vmem [resolvable:$true] %s28
      %34 = dma.hbm_to_vmem [thread:$0]  %s27, 512, %s29, [#allocation6], 128, 128, 8
    $region9: #{tpu_custom_call.1} parent=1 // pred_fallthru
      _
    // Predicated region
    $region10: #{tpu_custom_call.1} parent=1 // pred_check
      _
    $region11: #{tpu_custom_call.1} parent=1 // pred_check_branch
      %36 = sbr.rel (0) target = $region13
    $region12: #{tpu_custom_call.1} parent=1 // pred_region
      _
    $region13: #{tpu_custom_call.1} parent=1 // pred_fallthru
      _
    // Predicated region
    $region14: #{tpu_custom_call.1} parent=1 // pred_check
      _
    $region15: #{tpu_custom_call.1} parent=1 // pred_check_branch
      %38 = sbr.rel (0) target = $region17
    $region16: #{tpu_custom_call.1} parent=1 // pred_region
      %40 = dma.done [#allocation3], 128
    $region17: #{tpu_custom_call.1} parent=1 // pred_fallthru
      _
    // Predicated region
    $region18: #{tpu_custom_call.1} parent=1 // pred_check
      _
    $region19: #{tpu_custom_call.1} parent=1 // pred_check_branch
      %42 = sbr.rel (0) target = $region21
    $region20: #{tpu_custom_call.1} parent=1 // pred_region
      %44 = dma.done [#allocation6], 512
    $region21: #{tpu_custom_call.1} parent=1 // pred_fallthru
      _
    %v45 = vld [vmem:[#allocation2] sm:$0xff]
    %v46 = vld [vmem:[#allocation5] sm:$0xff]
    %v47 = vld [vmem:[#allocation5 + $0x8] sm:$0xff]
    %v48 = vld [vmem:[#allocation5 + $0x10] sm:$0xff]
    %v49 = vld [vmem:[#allocation5 + $0x18] sm:$0xff]
    %v50 = vld [vmem:[%s2] sm:$0x1]
    %v52 = vperm.slane %v50, 0
    %vm54 = vcmask 261120
    %v56 = vsel %vm54, %v45, 0
    %58 = vmatpush.msra.mxu0 0.0
    %59 = vmatpush.msra.mxu0 0.0
    %60 = vmatpush.msra.mxu0 0.0
    %61 = vmatpush.msra.mxu0 0.0
    %62 = vmatpush.msra.mxu0 0.0
    %63 = vmatpush.msra.mxu0 0.0
    %64 = vmatpush.msra.mxu0 0.0
    %65 = vmatpush.msra.mxu0 0.0
    %66 = vmatpush.msra.mxu0 0.0
    %67 = vmatpush.msra.mxu0 0.0
    %68 = vmatpush.msra.mxu0 0.0
    %69 = vmatpush.msra.mxu0 0.0
    %70 = vmatpush.msra.mxu0 %v49
    %71 = vmatpush.msra.mxu0 %v48
    %72 = vmatpush.msra.mxu0 %v47
    %73 = vmatpush.msra.mxu0 %v46
    %74 = vmatmul.f32.gmra.mxu0 %v56
    %v75 = vpop.f32.mrf.mxu0
    %v76 = vadd.f32 %v52, %v75
    %77 = vdwg.mxu0
    %v78 = vmul.f32 %v76, 30.0
    %v79 = vand.u32 2147483647, %v78
    %vm80 = vcmp.le.f32.partialorder %v79, 0.7853982
    %vm81 = vcmp.lt.s32.totalorder %v78, 0
    %v82 = vand.u32 %v78, 2139095040
    %v83 = vshrl.u32 %v82, 23
    %v84 = vsub.s32 %v83, 127
    %v85 = vand.u32 2147483647, %v78
    %v86 = vand.u32 %v85, 8388607
    %v87 = vor.u32 %v86, 8388608
    %v88 = vsub.s32 0, %v87
    %v89 = vadd.s32 %v84, 1
    %vm90 = vcmp.gt.s32.totalorder %v89, 0
    %v91 = vsel %vm90, %v89, 0
    %v92 = vshrl.u32 %v91, 5
    %v93 = vand.u32 %v91, 31
    %v94 = vsub.s32 32, %v93
    %v95 = vshrl.u32 683565275, %v94
    %v96 = vshll.u32 683565275, %v93
    %v97 = vshrl.u32 2475754826, %v94
    %v98 = vor.u32 %v96, %v97
    %v99 = vshll.u32 2475754826, %v93
    %v100 = vshrl.u32 2131351028, %v94
    %v101 = vor.u32 %v99, %v100
    %v102 = vshll.u32 2131351028, %v93
    %v103 = vshrl.u32 2102212464, %v94
    %v104 = vor.u32 %v102, %v103
    %v105 = vshll.u32 2102212464, %v93
    %v106 = vshrl.u32 920167782, %v94
    %v107 = vor.u32 %v105, %v106
    %v108 = vshll.u32 920167782, %v93
    %v109 = vshrl.u32 1326507024, %v94
    %v110 = vor.u32 %v108, %v109
    %vm111 = vcmp.lt.s32.totalorder %v92, 1
    %vm112 = vcmp.lt.s32.totalorder %v92, 2
    %vm113 = vcmp.lt.s32.totalorder %v92, 3
    %vm114 = vcmp.lt.s32.totalorder %v92, 4
    %v115 = vsel %vm111, %v95, %v98
    %v116 = vsel %vm114, %v104, 2102212464
    %v117 = vsel %vm113, %v101, %v116
    %v118 = vsel %vm112, %v115, %v117
    %v119 = vsel %vm111, %v98, %v101
    %v120 = vsel %vm114, %v107, 920167782
    %v121 = vsel %vm113, %v104, %v120
    %v122 = vsel %vm112, %v119, %v121
    %v123 = vsel %vm111, %v101, %v104
    %v124 = vsel %vm114, %v110, 1326507024
    %v125 = vsel %vm113, %v107, %v124
    %v126 = vsel %vm112, %v123, %v125
    %v127 = vshll.u32 %v87, 8
    %v128 = vand.u32 %v127, 65535
    %v129 = vshrl.u32 %v127, 16
    %v130 = vand.u32 %v126, 65535
    %v131 = vshrl.u32 %v126, 16
    %v132 = vmul.u32 %v128, %v130
    %v133 = vmul.u32 %v128, %v131
    %v134 = vmul.u32 %v129, %v130
    %v135 = vmul.u32 %v129, %v131
    %v136 = vshll.u32 %v133, 16
    %v137 = vshrl.u32 %v133, 16
    %v138 = vshll.u32 %v134, 16
    %v139 = vshrl.u32 %v134, 16
    %vm140 = vc.u32 %v132, %v136
    %v141 = vsel %vm140, 1, 0
    %v142 = vadd.s32 %v132, %v136
    %v143 = vadd.s32 %v135, %v141
    %vm144 = vc.u32 %v142, %v138
    %v145 = vsel %vm144, 1, 0
    %v146 = vadd.s32 %v142, %v138
    %v147 = vadd.s32 %v143, %v145
    %v148 = vadd.s32 %v147, %v137
    %v149 = vadd.s32 %v148, %v139
    %v150 = vand.u32 %v127, 65535
    %v151 = vshrl.u32 %v127, 16
    %v152 = vand.u32 %v122, 65535
    %v153 = vshrl.u32 %v122, 16
    %v154 = vmul.u32 %v150, %v152
    %v155 = vmul.u32 %v150, %v153
    %v156 = vmul.u32 %v151, %v152
    %v157 = vmul.u32 %v151, %v153
    %v158 = vshll.u32 %v155, 16
    %v159 = vshrl.u32 %v155, 16
    %v160 = vshll.u32 %v156, 16
    %v161 = vshrl.u32 %v156, 16
    %vm162 = vc.u32 %v154, %v158
    %v163 = vsel %vm162, 1, 0
    %v164 = vadd.s32 %v154, %v158
    %v165 = vadd.s32 %v157, %v163
    %vm166 = vc.u32 %v164, %v160
    %v167 = vsel %vm166, 1, 0
    %v168 = vadd.s32 %v164, %v160
    %v169 = vadd.s32 %v165, %v167
    %v170 = vadd.s32 %v169, %v159
    %v171 = vadd.s32 %v170, %v161
    %v172 = vmul.u32 %v127, %v118
    %v173 = vadd.s32 %v149, %v168
    %vm174 = vc.u32 %v149, %v168
    %v175 = vadd.s32 %v171, 1
    %v176 = vsel %vm174, %v175, %v171
    %v177 = vadd.s32 %v172, %v176
    %v178 = vadd.s32 %v177, 536870912
    %v179 = vshrl.u32 %v178, 30
    %v180 = vshll.u32 %v179, 30
    %v181 = vsub.s32 %v177, %v180
    %vm182 = vcmp.lt.s32.totalorder %v181, 0
    %v183 = vsub.s32 0, %v181
    %v184 = vsel %vm182, %v183, %v181
    %v185 = vclz %v184
    %v186 = vsub.s32 %v185, 2
    %vm187 = vcmp.gt.s32.totalorder 0, %v186
    %v188 = vsel %vm187, 0, %v186
    %v189 = vsub.s32 32, %v188
    %v190 = vshll.u32 %v181, %v188
    %v191 = vshrl.u32 %v173, %v189
    %v192 = vor.u32 %v190, %v191
    %v193 = vsub.s32 4294967266, %v188
    %v194 = vadd.s32 %v193, 127
    %v195 = vshll.u32 %v194, 23
    %v196 = vor.u32 4788187, %v195
    %v197 = vand.u32 2147483647, %v196
    %v199 = vcvt.s32.f32 %v192
    %v200 = vmul.f32 %v199, %v197
    %v201 = vxor.u32 %v200, 2147483648
    %v202 = vsel %vm81, %v201, %v200
    %v203 = vsub.s32 4, %v179
    %v204 = vsel %vm81, %v203, %v179
    %v205 = vsel %vm80, %v78, %v202
    %v206 = vsel %vm80, 0, %v204
    %v207 = vmul.f32 %v205, %v205
    %v208 = vmul.f32 %v207, -0.001358992
    %v209 = vadd.f32 %v208, 0.041655596
    %v210 = vmul.f32 %v207, %v209
    %v211 = vadd.f32 %v210, -0.4999988
    %v212 = vmul.f32 %v207, %v211
    %v213 = vadd.f32 1.0, %v212
    %v214 = vmul.f32 %v205, %v205
    %v215 = vmul.f32 %v214, -0.00019511016
    %v216 = vadd.f32 %v215, 0.008332121
    %v217 = vmul.f32 %v214, %v216
    %v218 = vadd.f32 %v217, -0.16666654
    %v219 = vmul.f32 %v214, %v218
    %v220 = vadd.f32 %v219, 1.0
    %v221 = vmul.f32 %v220, %v205
    %vm222 = vweird.f32 %v78
    %v223 = vadd.s32 %v206, 3
    %v224 = vand.u32 %v223, 3
    %vm225 = vcmp.lt.s32.totalorder %v224, 2
    %vm226 = vcmp.eq.s32.totalorder %v224, 0
    %v227 = vxor.u32 %v221, 2147483648
    %v228 = vsel %vm226, %v213, %v227
    %vm229 = vcmp.eq.s32.totalorder %v224, 2
    %v230 = vxor.u32 %v213, 2147483648
    %v231 = vsel %vm229, %v230, %v221
    %v232 = vsel %vm225, %v228, %v231
    %v233 = vsel %vm222, nan, %v232
    %234 = vst.msk [vmem:[#allocation7] sm:$0xff] %vm54, %v233
    // Predicated region
    $region22: #{tpu_custom_call.1} parent=1 // pred_check
      _
    $region23: #{tpu_custom_call.1} parent=1 // pred_check_branch
      %236 = sbr.rel (0) target = $region25
    $region24: #{tpu_custom_call.1} parent=1 // pred_region
      %238 = vsyncadd [#allocation4], 0
      %s240 = sshll.u32 [#allocation7], 4
      %s241 = int_to_ptr.vmem [resolvable:$true] %s240
      %s242 = sshll.u32 %s3, 4
      %s243 = int_to_ptr.hbm [resolvable:$true] %s242
      %245 = dma.vmem_to_hbm [thread:$0]  %s241, 128, %s243, [#allocation4]
    $region25: #{tpu_custom_call.1} parent=1 // pred_fallthru
      _
    // Predicated region
    $region26: #{tpu_custom_call.1} parent=1 // pred_check
      _
    $region27: #{tpu_custom_call.1} parent=1 // pred_check_branch
      %247 = sbr.rel (0) target = $region29
    $region28: #{tpu_custom_call.1} parent=1 // pred_region
      %249 = dma.done [#allocation4], 128
    $region29: #{tpu_custom_call.1} parent=1 // pred_fallthru
      _
    %250 = vsyncpa [#allocation3], 1
    %251 = vsyncpa [#allocation6], 1
    %252 = vsyncpa [#allocation4], 1

// kernel: tpu_custom_call.1
$region0: #{tpu_custom_call.1}
  #allocation0 [shape = 'u32[]', space=smem, size = 0x4, offset = 0x4, fixed_abs, tag = 'smem constant byte address 0x4 - core index']
  #allocation1 [shape = 'u32[72,128]{1,0:T(1,128)}', space=vmem, size = 0x9000, scoped, tag = 'internal scratch']
  %s0 = inlined_call_operand.hbm [shape: f32[8,32], index: 0, kind: input, shape index: {}]
  %s1 = inlined_call_operand.hbm [shape: f32[32,32], index: 1, kind: input, shape index: {}]
  %s2 = inlined_call_operand.vmem [shape: f32[1,32], index: 2, kind: input, shape index: {}]
  %s3 = inlined_call_operand.hbm [shape: f32[8,32], index: 3, kind: output, shape index: {}]
  %s4 = sld [smem:[#allocation0]]
  $region30: #{tpu_custom_call.1} parent=0
    _
  %s6 = ssub.s32 1, %s4
  %s7 = scalar_select 0, %s6, %s4
  $region1: #{tpu_custom_call.1} parent=0
    #allocation2 [shape = 'u8[4096]{0}', space=vmem, size = 0x1000, scoped, tag = 'input window, operand 0, single buffered']
    #allocation3 [shape = 's32[1]{0}', space=sflag, size = 0x4, scoped, tag = 'scoped memory for tpu_custom_call.1']
    #allocation4 [shape = 's32[1]{0}', space=sflag, size = 0x4, scoped, tag = 'scoped memory for tpu_custom_call.1']
    #allocation5 [shape = 'u8[16384]{0}', space=vmem, size = 0x4000, scoped, tag = 'input window, operand 1, single buffered']
    #allocation6 [shape = 's32[1]{0}', space=sflag, size = 0x4, scoped, tag = 'scoped memory for tpu_custom_call.1']
    #allocation7 [shape = 'u8[4096]{0}', space=vmem, size = 0x1000, scoped, tag = 'output window, operand 0, single buffered']
    %8 = vsyncpa [#allocation3], 0
    %9 = vsyncpa [#allocation6], 0
    %10 = vsyncpa [#allocation4], 0
    // Predicated region
    $region2: #{tpu_custom_call.1} parent=1 // pred_check
      _
    $region3: #{tpu_custom_call.1} parent=1 // pred_check_branch
      %12 = sbr.rel (0) target = $region5
    $region4: #{tpu_custom_call.1} parent=1 // pred_region
      %14 = vsyncadd [#allocation3], 0
      %s16 = sshll.u32 %s0, 4
      %s17 = int_to_ptr.hbm [resolvable:$true] %s16
      %s18 = sshll.u32 [#allocation2], 4
      %s19 = int_to_ptr.vmem [resolvable:$true] %s18
      %21 = dma.hbm_to_vmem [thread:$0]  %s17, 128, %s19, [#allocation3]
    $region5: #{tpu_custom_call.1} parent=1 // pred_fallthru
      _
    // Predicated region
    $region6: #{tpu_custom_call.1} parent=1 // pred_check
      _
    $region7: #{tpu_custom_call.1} parent=1 // pred_check_branch
      %23 = sbr.rel (0) target = $region9
    $region8: #{tpu_custom_call.1} parent=1 // pred_region
      %25 = vsyncadd [#allocation6], 0
      %s26 = sshll.u32 %s1, 4
      %s27 = int_to_ptr.hbm [resolvable:$true] %s26
      %s28 = sshll.u32 [#allocation5], 4
      %s29 = int_to_ptr.vmem [resolvable:$true] %s28
      %34 = dma.hbm_to_vmem [thread:$0]  %s27, 512, %s29, [#allocation6], 128, 128, 8
    $region9: #{tpu_custom_call.1} parent=1 // pred_fallthru
      _
    // Predicated region
    $region10: #{tpu_custom_call.1} parent=1 // pred_check
      _
    $region11: #{tpu_custom_call.1} parent=1 // pred_check_branch
      %36 = sbr.rel (0) target = $region13
    $region12: #{tpu_custom_call.1} parent=1 // pred_region
      _
    $region13: #{tpu_custom_call.1} parent=1 // pred_fallthru
      _
    // Predicated region
    $region14: #{tpu_custom_call.1} parent=1 // pred_check
      _
    $region15: #{tpu_custom_call.1} parent=1 // pred_check_branch
      %38 = sbr.rel (0) target = $region17
    $region16: #{tpu_custom_call.1} parent=1 // pred_region
      %40 = dma.done [#allocation3], 128
    $region17: #{tpu_custom_call.1} parent=1 // pred_fallthru
      _
    // Predicated region
    $region18: #{tpu_custom_call.1} parent=1 // pred_check
      _
    $region19: #{tpu_custom_call.1} parent=1 // pred_check_branch
      %42 = sbr.rel (0) target = $region21
    $region20: #{tpu_custom_call.1} parent=1 // pred_region
      %44 = dma.done [#allocation6], 512
    $region21: #{tpu_custom_call.1} parent=1 // pred_fallthru
      _
    %v45 = vld [vmem:[#allocation2] sm:$0xff]
    %v46 = vld [vmem:[#allocation5] sm:$0xff]
    %v47 = vld [vmem:[#allocation5 + $0x8] sm:$0xff]
    %v48 = vld [vmem:[#allocation5 + $0x10] sm:$0xff]
    %v49 = vld [vmem:[#allocation5 + $0x18] sm:$0xff]
    %v50 = vld [vmem:[%s2] sm:$0x1]
    %v52 = vperm.slane %v50, 0
    %vm54 = vcmask 261120
    %v56 = vsel %vm54, %v45, 0
    %58 = vmatpush.msra.mxu0 0.0
    %59 = vmatpush.msra.mxu0 0.0
    %60 = vmatpush.msra.mxu0 0.0
    %61 = vmatpush.msra.mxu0 0.0
    %62 = vmatpush.msra.mxu0 0.0
    %63 = vmatpush.msra.mxu0 0.0
    %64 = vmatpush.msra.mxu0 0.0
    %65 = vmatpush.msra.mxu0 0.0
    %66 = vmatpush.msra.mxu0 0.0
    %67 = vmatpush.msra.mxu0 0.0
    %68 = vmatpush.msra.mxu0 0.0
    %69 = vmatpush.msra.mxu0 0.0
    %70 = vmatpush.msra.mxu0 %v49
    %71 = vmatpush.msra.mxu0 %v48
    %72 = vmatpush.msra.mxu0 %v47
    %73 = vmatpush.msra.mxu0 %v46
    %74 = vmatmul.f32.gmra.mxu0 %v56
    %v75 = vpop.f32.mrf.mxu0
    %v76 = vadd.f32 %v52, %v75
    %77 = vdwg.mxu0
    %v78 = vmul.f32 %v76, 30.0
    %v79 = vand.u32 2147483647, %v78
    %vm80 = vcmp.le.f32.partialorder %v79, 0.7853982
    %vm81 = vcmp.lt.s32.totalorder %v78, 0
    %v82 = vand.u32 %v78, 2139095040
    %v83 = vshrl.u32 %v82, 23
    %v84 = vsub.s32 %v83, 127
    %v85 = vand.u32 2147483647, %v78
    %v86 = vand.u32 %v85, 8388607
    %v87 = vor.u32 %v86, 8388608
    %v88 = vsub.s32 0, %v87
    %v89 = vadd.s32 %v84, 1
    %vm90 = vcmp.gt.s32.totalorder %v89, 0
    %v91 = vsel %vm90, %v89, 0
    %v92 = vshrl.u32 %v91, 5
    %v93 = vand.u32 %v91, 31
    %v94 = vsub.s32 32, %v93
    %v95 = vshrl.u32 683565275, %v94
    %v96 = vshll.u32 683565275, %v93
    %v97 = vshrl.u32 2475754826, %v94
    %v98 = vor.u32 %v96, %v97
    %v99 = vshll.u32 2475754826, %v93
    %v100 = vshrl.u32 2131351028, %v94
    %v101 = vor.u32 %v99, %v100
    %v102 = vshll.u32 2131351028, %v93
    %v103 = vshrl.u32 2102212464, %v94
    %v104 = vor.u32 %v102, %v103
    %v105 = vshll.u32 2102212464, %v93
    %v106 = vshrl.u32 920167782, %v94
    %v107 = vor.u32 %v105, %v106
    %v108 = vshll.u32 920167782, %v93
    %v109 = vshrl.u32 1326507024, %v94
    %v110 = vor.u32 %v108, %v109
    %vm111 = vcmp.lt.s32.totalorder %v92, 1
    %vm112 = vcmp.lt.s32.totalorder %v92, 2
    %vm113 = vcmp.lt.s32.totalorder %v92, 3
    %vm114 = vcmp.lt.s32.totalorder %v92, 4
    %v115 = vsel %vm111, %v95, %v98
    %v116 = vsel %vm114, %v104, 2102212464
    %v117 = vsel %vm113, %v101, %v116
    %v118 = vsel %vm112, %v115, %v117
    %v119 = vsel %vm111, %v98, %v101
    %v120 = vsel %vm114, %v107, 920167782
    %v121 = vsel %vm113, %v104, %v120
    %v122 = vsel %vm112, %v119, %v121
    %v123 = vsel %vm111, %v101, %v104
    %v124 = vsel %vm114, %v110, 1326507024
    %v125 = vsel %vm113, %v107, %v124
    %v126 = vsel %vm112, %v123, %v125
    %v127 = vshll.u32 %v87, 8
    %v128 = vand.u32 %v127, 65535
    %v129 = vshrl.u32 %v127, 16
    %v130 = vand.u32 %v126, 65535
    %v131 = vshrl.u32 %v126, 16
    %v132 = vmul.u32 %v128, %v130
    %v133 = vmul.u32 %v128, %v131
    %v134 = vmul.u32 %v129, %v130
    %v135 = vmul.u32 %v129, %v131
    %v136 = vshll.u32 %v133, 16
    %v137 = vshrl.u32 %v133, 16
    %v138 = vshll.u32 %v134, 16
    %v139 = vshrl.u32 %v134, 16
    %vm140 = vc.u32 %v132, %v136
    %v141 = vsel %vm140, 1, 0
    %v142 = vadd.s32 %v132, %v136
    %v143 = vadd.s32 %v135, %v141
    %vm144 = vc.u32 %v142, %v138
    %v145 = vsel %vm144, 1, 0
    %v146 = vadd.s32 %v142, %v138
    %v147 = vadd.s32 %v143, %v145
    %v148 = vadd.s32 %v147, %v137
    %v149 = vadd.s32 %v148, %v139
    %v150 = vand.u32 %v127, 65535
    %v151 = vshrl.u32 %v127, 16
    %v152 = vand.u32 %v122, 65535
    %v153 = vshrl.u32 %v122, 16
    %v154 = vmul.u32 %v150, %v152
    %v155 = vmul.u32 %v150, %v153
    %v156 = vmul.u32 %v151, %v152
    %v157 = vmul.u32 %v151, %v153
    %v158 = vshll.u32 %v155, 16
    %v159 = vshrl.u32 %v155, 16
    %v160 = vshll.u32 %v156, 16
    %v161 = vshrl.u32 %v156, 16
    %vm162 = vc.u32 %v154, %v158
    %v163 = vsel %vm162, 1, 0
    %v164 = vadd.s32 %v154, %v158
    %v165 = vadd.s32 %v157, %v163
    %vm166 = vc.u32 %v164, %v160
    %v167 = vsel %vm166, 1, 0
    %v168 = vadd.s32 %v164, %v160
    %v169 = vadd.s32 %v165, %v167
    %v170 = vadd.s32 %v169, %v159
    %v171 = vadd.s32 %v170, %v161
    %v172 = vmul.u32 %v127, %v118
    %v173 = vadd.s32 %v149, %v168
    %vm174 = vc.u32 %v149, %v168
    %v175 = vadd.s32 %v171, 1
    %v176 = vsel %vm174, %v175, %v171
    %v177 = vadd.s32 %v172, %v176
    %v178 = vadd.s32 %v177, 536870912
    %v179 = vshrl.u32 %v178, 30
    %v180 = vshll.u32 %v179, 30
    %v181 = vsub.s32 %v177, %v180
    %vm182 = vcmp.lt.s32.totalorder %v181, 0
    %v183 = vsub.s32 0, %v181
    %v184 = vsel %vm182, %v183, %v181
    %v185 = vclz %v184
    %v186 = vsub.s32 %v185, 2
    %vm187 = vcmp.gt.s32.totalorder 0, %v186
    %v188 = vsel %vm187, 0, %v186
    %v189 = vsub.s32 32, %v188
    %v190 = vshll.u32 %v181, %v188
    %v191 = vshrl.u32 %v173, %v189
    %v192 = vor.u32 %v190, %v191
    %v193 = vsub.s32 4294967266, %v188
    %v194 = vadd.s32 %v193, 127
    %v195 = vshll.u32 %v194, 23
    %v196 = vor.u32 4788187, %v195
    %v197 = vand.u32 2147483647, %v196
    %v199 = vcvt.s32.f32 %v192
    %v200 = vmul.f32 %v199, %v197
    %v201 = vxor.u32 %v200, 2147483648
    %v202 = vsel %vm81, %v201, %v200
    %v203 = vsub.s32 4, %v179
    %v204 = vsel %vm81, %v203, %v179
    %v205 = vsel %vm80, %v78, %v202
    %v206 = vsel %vm80, 0, %v204
    %v207 = vmul.f32 %v205, %v205
    %v208 = vmul.f32 %v207, -0.001358992
    %v209 = vadd.f32 %v208, 0.041655596
    %v210 = vmul.f32 %v207, %v209
    %v211 = vadd.f32 %v210, -0.4999988
    %v212 = vmul.f32 %v207, %v211
    %v213 = vadd.f32 1.0, %v212
    %v214 = vmul.f32 %v205, %v205
    %v215 = vmul.f32 %v214, -0.00019511016
    %v216 = vadd.f32 %v215, 0.008332121
    %v217 = vmul.f32 %v214, %v216
    %v218 = vadd.f32 %v217, -0.16666654
    %v219 = vmul.f32 %v214, %v218
    %v220 = vadd.f32 %v219, 1.0
    %v221 = vmul.f32 %v220, %v205
    %vm222 = vweird.f32 %v78
    %v223 = vadd.s32 %v206, 3
    %v224 = vand.u32 %v223, 3
    %vm225 = vcmp.lt.s32.totalorder %v224, 2
    %vm226 = vcmp.eq.s32.totalorder %v224, 0
    %v227 = vxor.u32 %v221, 2147483648
    %v228 = vsel %vm226, %v213, %v227
    %vm229 = vcmp.eq.s32.totalorder %v224, 2
    %v230 = vxor.u32 %v213, 2147483648
    %v231 = vsel %vm229, %v230, %v221
    %v232 = vsel %vm225, %v228, %v231
    %v233 = vsel %vm222, nan, %v232
    %234 = vst.msk [vmem:[#allocation7] sm:$0xff] %vm54, %v233
    // Predicated region
    $region22: #{tpu_custom_call.1} parent=1 // pred_check
      _
    $region23: #{tpu_custom_call.1} parent=1 // pred_check_branch
      %236 = sbr.rel (0) target = $region25
    $region24: #{tpu_custom_call.1} parent=1 // pred_region
      %238 = vsyncadd [#allocation4], 0
      %s240 = sshll.u32 [#allocation7], 4
      %s241 = int_to_ptr.vmem [resolvable:$true] %s240
      %s242 = sshll.u32 %s3, 4
      %s243 = int_to_ptr.hbm [resolvable:$true] %s242
      %245 = dma.vmem_to_hbm [thread:$0]  %s241, 128, %s243, [#allocation4]
    $region25: #{tpu_custom_call.1} parent=1 // pred_fallthru
      _
    // Predicated region
    $region26: #{tpu_custom_call.1} parent=1 // pred_check
      _
    $region27: #{tpu_custom_call.1} parent=1 // pred_check_branch
      %247 = sbr.rel (0) target = $region29
    $region28: #{tpu_custom_call.1} parent=1 // pred_region
      %249 = dma.done [#allocation4], 128
    $region29: #{tpu_custom_call.1} parent=1 // pred_fallthru
      _
    %250 = vsyncpa [#allocation3], 1
    %251 = vsyncpa [#allocation6], 1
    %252 = vsyncpa [#allocation4], 1

</llo_original>
